<compile_context>
chip_gen: v5e
topology: v5e:2x2
jax: 0.10.0
libtpu: 0.0.40
codegen_flags: <defaults>
</compile_context>

<pallas_src>
import functools

import jax
import jax.numpy as jnp
from jax.experimental import pallas as pl
from jax.experimental.pallas import tpu as pltpu


def _round_up(n, m):
    return ((n + m - 1) // m) * m


def _tubelet_matmul_kernel(p_ref, w_ref, b_ref, o_ref):
    # p_ref: (tm, K_dim)    bf16 patch-row tile (double-buffered by default)
    # w_ref: (K_dim, E_pad) bf16 weight, resident (single-buffered, DMA'd once)
    # b_ref: (1, E_pad)     f32 bias, resident
    # o_ref: (tm, E_pad)    output tile
    acc = jnp.dot(p_ref[...], w_ref[...], preferred_element_type=jnp.float32)
    o_ref[...] = (acc + b_ref[...]).astype(o_ref.dtype)


def prepare_tubelet_params(weight, bias, *, k_dim, e_pad):
    """Pack Conv3d weight (E, C, kT, kH, kW) -> (k_dim, e_pad) bf16 and bias ->
    (1, e_pad) f32.  In a real model this runs once at load time, so the
    transposed weight is never re-materialized on the per-step path."""
    E = weight.shape[0]
    K = int(weight.size) // E
    w_k = weight.reshape(E, K).T.astype(jnp.bfloat16)            # (K, E)
    if (k_dim, e_pad) != (K, E):
        w_k = jnp.pad(w_k, ((0, k_dim - K), (0, e_pad - E)))     # zero padding
    b_k = bias.astype(jnp.float32)
    if e_pad != E:
        b_k = jnp.pad(b_k, (0, e_pad - E))
    return w_k, b_k.reshape(1, e_pad)


def _pick_row_tile(M, k_dim, e_pad, out_itemsize):
    """Row-tile size tm from a VMEM budget: double-buffered patches + output
    plus the single-buffered resident weight must stay well under v7x's 64 MiB
    physical VMEM.  The grid is kept at >= 2 (and an even number of) row tiles
    so the "parallel" grid axis feeds both v7x TensorCores."""
    budget = 40 * 1024 * 1024
    resident = k_dim * e_pad * 2 + e_pad * 4          # weight (bf16, 1 buf) + bias
    tm_max = 128
    for cand in (1024, 512, 256, 128):                # prefer the biggest that fits
        if resident + 2 * cand * (k_dim * 2 + e_pad * out_itemsize) <= budget:
            tm_max = cand
            break
    n_tiles = max(2, pl.cdiv(M, tm_max))
    if n_tiles % 2:
        n_tiles += 1                                   # even count for v7x's 2 TCs
    tm = _round_up(pl.cdiv(M, n_tiles), 16)            # bf16 LHS: packed sublane pairs
    return max(16, min(tm, tm_max))


def tubelet_embed_pallas(x, weight, bias, *, early_stride, patch_size,
                         out_dtype=None):
    """x: (B, C, T, H, W)   weight: (E, C, kT, kH, kW)   bias: (E,)."""
    B, C, T, H, W = x.shape
    E = weight.shape[0]
    ps = patch_size
    assert T == early_stride and H % ps == 0 and W % ps == 0
    Hp, Wp = H // ps, W // ps
    num_patches = Hp * Wp

    K = C * T * ps * ps
    M = B * num_patches
    out_dtype = x.dtype if out_dtype is None else jnp.dtype(out_dtype)

    # Lane-dense sizes: pad E (output lanes / MXU columns) and K (contraction /
    # patch lanes) to multiples of 128 only when not already aligned.
    E_pad = E if E % 128 == 0 else _round_up(E, 128)
    K_dim = K if K % 128 == 0 else _round_up(K, 128)

    tm = _pick_row_tile(M, K_dim, E_pad, jnp.dtype(out_dtype).itemsize)
    grid = (pl.cdiv(M, tm),)     # ceil-div grid: the partial tail tile is masked
                                 # on store -> no zero-row padding, no wasted MXU work.

    # ---- glue (plain JAX): tubelet extraction in (c, t, u, v) flatten order,
    # matching Conv3d's (E, C, kT, kH, kW) weight layout.  The bf16 cast (and
    # the K pad, when needed) fuse into the same XLA transpose pass, so this is
    # a single read(f32) + write(bf16) of the MxK data.
    # TODO(synk): see header -- in-kernel fusion of this gather is not done
    # because Mosaic does not reliably lower the required strided-lane gather +
    # multi-contracting-dim dot_general / rank-4 relayout.
    patches = x.astype(jnp.bfloat16).reshape(B, C * T, Hp, ps, Wp, ps)
    patches = patches.transpose(0, 2, 4, 1, 3, 5)      # (B, Hp, Wp, CT, u, v)
    patches = patches.reshape(M, K)
    if K_dim != K:
        # Keep the K pad as explicit zeros: with a partial M tail tile the K
        # edge must never contain garbage (NaN*0 != 0 would pollute real rows).
        patches = jnp.pad(patches, ((0, 0), (0, K_dim - K)))

    w_k, b_k = prepare_tubelet_params(weight, bias, k_dim=K_dim, e_pad=E_pad)

    bytes_accessed = (M * K_dim * 2                       # patches (bf16)
                      + K_dim * E_pad * 2                 # weight (bf16, read once)
                      + E_pad * 4                         # bias (f32)
                      + M * E_pad * jnp.dtype(out_dtype).itemsize)
    cost = pl.CostEstimate(flops=2 * M * K_dim * E_pad,
                           transcendentals=0,
                           bytes_accessed=bytes_accessed)

    out = pl.pallas_call(
        _tubelet_matmul_kernel,
        out_shape=jax.ShapeDtypeStruct((M, E_pad), out_dtype),
        grid_spec=pltpu.PrefetchScalarGridSpec(
            num_scalar_prefetch=0,
            grid=grid,
            in_specs=[
                # Row tile of patches: default double-buffering overlaps the
                # next tile's HBM read with the current tile's MXU work.
                pl.BlockSpec((tm, K_dim), lambda i: (i, 0)),
                # Resident operands (constant index_map): single-buffered; a
                # second buffer would be dead VMEM that shrinks the tm budget.
                pl.BlockSpec((K_dim, E_pad), lambda i: (0, 0),
                             pipeline_mode=pl.Buffered(1)),
                pl.BlockSpec((1, E_pad), lambda i: (0, 0),
                             pipeline_mode=pl.Buffered(1)),
            ],
            out_specs=pl.BlockSpec((tm, E_pad), lambda i: (i, 0)),
        ),
        compiler_params=pltpu.CompilerParams(
            dimension_semantics=("parallel",),        # shard row tiles over v7x's 2 TCs
            vmem_limit_bytes=48 * 1024 * 1024),       # explicit cap < v7x's 64 MiB VMEM
        cost_estimate=cost,
    )(patches, w_k, b_k)

    if E_pad != E:
        out = out[:, :E]                              # drop the E lane padding
    return out.reshape(B, num_patches, E)


def tubelet_embed_reference(x, weight, bias, *, early_stride, patch_size):
    """Pure-JAX f32 reference matching PyTorch Conv3d(kernel=stride) semantics."""
    B, C, T, H, W = x.shape
    E = weight.shape[0]
    ps = patch_size
    Hp, Wp = H // ps, W // ps
    patches = x.reshape(B, C * T, Hp, ps, Wp, ps).transpose(0, 2, 4, 1, 3, 5)
    patches = patches.reshape(B * Hp * Wp, C * T * ps * ps)
    out = patches @ weight.reshape(E, -1).T + bias[None, :]
    return out.reshape(B, Hp * Wp, E)


if __name__ == "__main__":
    # Small shapes consistent with the module (img_size=48, early_stride=4,
    # patch_size=4, in_chans=3, embed_dim=32) -> x: (3, 3, 4, 48, 48).
    # M = 3 * 144 = 432 with tm=224 exercises the ceil-div grid AND the masked
    # partial tail tile; K = 192 -> 256 and E = 32 -> 128 exercise the
    # conditional lane padding.
    B, C, T, H, W = 3, 3, 4, 48, 48
    ps, E = 4, 32

    key = jax.random.PRNGKey(0)
    kx, kw, kb = jax.random.split(key, 3)
    x = jax.random.normal(kx, (B, C, T, H, W), dtype=jnp.float32)
    weight = jax.random.normal(kw, (E, C, T, ps, ps), dtype=jnp.float32) * 0.02
    bias = jax.random.normal(kb, (E,), dtype=jnp.float32) * 0.02

    fn = functools.partial(tubelet_embed_pallas, early_stride=T, patch_size=ps)
    out = jax.block_until_ready(jax.jit(fn)(x, weight, bias))

    ref = tubelet_embed_reference(x, weight, bias, early_stride=T, patch_size=ps)
    assert out.shape == (B, (H // ps) * (W // ps), E), out.shape
    assert out.dtype == x.dtype
    # bf16 MXU inputs with f32 accumulation -> compare at bf16-level tolerance.
    assert jnp.allclose(out, ref, atol=2e-2, rtol=2e-2), (
        float(jnp.max(jnp.abs(out - ref))))

    # bf16 output path (halves the output HBM write / VMEM; what a downstream
    # bf16 transformer would consume).
    fn_bf16 = functools.partial(tubelet_embed_pallas, early_stride=T,
                                patch_size=ps, out_dtype=jnp.bfloat16)
    out_bf16 = jax.block_until_ready(jax.jit(fn_bf16)(x, weight, bias))
    assert out_bf16.dtype == jnp.bfloat16
    assert jnp.allclose(out_bf16.astype(jnp.float32), ref, atol=5e-2, rtol=5e-2)

    print("KERNEL_OK")
</pallas_src>

<mosaic_0001>
module attributes {stable_mosaic.version = 11 : i64} {
  func.func @_tubelet_matmul_kernel(%arg0: i32, %arg1: memref<224x256xbf16, #tpu.memory_space<vmem>>, %arg2: memref<256x128xbf16, #tpu.memory_space<vmem>>, %arg3: memref<1x128xf32, #tpu.memory_space<vmem>>, %arg4: memref<224x128xf32, #tpu.memory_space<vmem>>) attributes {dimension_semantics = [#tpu.dimension_semantics<parallel>], iteration_bounds = array<i64: 2>, scalar_prefetch = 0 : i64, scratch_operands = 0 : i64, tpu.core_type = #tpu.core_type<tc>, window_params = [{transform_indices = @transform_0, window_bounds = array<i64: 224, 256>}, {pipeline_mode = #tpu.pipeline_mode<synchronous>, transform_indices = @transform_1, window_bounds = array<i64: 256, 128>}, {pipeline_mode = #tpu.pipeline_mode<synchronous>, transform_indices = @transform_2, window_bounds = array<i64: 1, 128>}, {transform_indices = @transform_3, window_bounds = array<i64: 224, 128>}]} {
    %c0 = arith.constant 0 : index
    %c0_0 = arith.constant 0 : index
    %0 = vector.load %arg1[%c0, %c0_0] : memref<224x256xbf16, #tpu.memory_space<vmem>>, vector<224x256xbf16>
    %c0_1 = arith.constant 0 : index
    %c0_2 = arith.constant 0 : index
    %1 = vector.load %arg2[%c0_1, %c0_2] : memref<256x128xbf16, #tpu.memory_space<vmem>>, vector<256x128xbf16>
    %cst = arith.constant dense<0.000000e+00> : vector<224x128xf32>
    %2 = tpu.matmul %0, %1, %cst {dimension_numbers = #tpu.dot_dimension_numbers<[1], [0], [0], [1], [0, 0, 1, 1], [], []>} : vector<224x256xbf16>, vector<256x128xbf16>, vector<224x128xf32> -> vector<224x128xf32>
    %c0_3 = arith.constant 0 : index
    %c0_4 = arith.constant 0 : index
    %3 = vector.load %arg3[%c0_3, %c0_4] : memref<1x128xf32, #tpu.memory_space<vmem>>, vector<1x128xf32>
    %4 = vector.broadcast %3 : vector<1x128xf32> to vector<224x128xf32>
    %5 = arith.addf %2, %4 : vector<224x128xf32>
    %c0_5 = arith.constant 0 : index
    %c0_6 = arith.constant 0 : index
    %6 = vector.load %arg4[%c0_5, %c0_6] : memref<224x128xf32, #tpu.memory_space<vmem>>, vector<224x128xf32>
    tpu.vector_store %arg4[%c0_5, %c0_6], %5 {strides = array<i32>} : memref<224x128xf32, #tpu.memory_space<vmem>>, vector<224x128xf32>,
    return
  }
  func.func @transform_0(%arg0: i32) -> (i32, i32) {
    %c0_i32 = arith.constant 0 : i32
    %c0_i32_0 = arith.constant 0 : i32
    return %arg0, %c0_i32 : i32, i32
  }
  func.func @transform_1(%arg0: i32) -> (i32, i32) {
    %c0_i32 = arith.constant 0 : i32
    %c0_i32_0 = arith.constant 0 : i32
    %c0_i32_1 = arith.constant 0 : i32
    return %c0_i32, %c0_i32_0 : i32, i32
  }
  func.func @transform_2(%arg0: i32) -> (i32, i32) {
    %c0_i32 = arith.constant 0 : i32
    %c0_i32_0 = arith.constant 0 : i32
    %c0_i32_1 = arith.constant 0 : i32
    return %c0_i32, %c0_i32_0 : i32, i32
  }
  func.func @transform_3(%arg0: i32) -> (i32, i32) {
    %c0_i32 = arith.constant 0 : i32
    %c0_i32_0 = arith.constant 0 : i32
    return %arg0, %c0_i32 : i32, i32
  }
}

</mosaic_0001>

<llo_original>
// kernel: tubelet_embed_pallas.1
$region0: #{tubelet_embed_pallas.1}
  #allocation0 [shape = 'u32[]', space=smem, size = 0x4, offset = 0x4, fixed_abs, tag = 'smem constant byte address 0x4 - core index']
  #allocation1 [shape = 'u32[72,128]{1,0:T(1,128)}', space=vmem, size = 0x9000, scoped, tag = 'internal scratch']
  %s0 = inlined_call_operand.vmem [shape: bf16[432,256], index: 0, kind: input, shape index: {}]
  %s1 = inlined_call_operand.vmem [shape: bf16[256,128], index: 1, kind: input, shape index: {}]
  %s2 = inlined_call_operand.vmem [shape: f32[1,128], index: 2, kind: input, shape index: {}]
  %s3 = inlined_call_operand.vmem [shape: f32[432,128], index: 3, kind: output, shape index: {}]
  %s4 = sld [smem:[#allocation0]]
  $region93: #{tubelet_embed_pallas.1} parent=0
    _
  %s6 = ssub.s32 1, %s4
  %s7 = scalar_select 0, %s6, %s4
  $region1: #{tubelet_embed_pallas.1} parent=0
    #allocation2 [shape = 'u8[229376]{0}', space=vmem, size = 0x38000, scoped, tag = 'output window, operand 0']
    loop: start=0, step=1, limit=4
    $region2: #{tubelet_embed_pallas.1} parent=1 // loop_pre_header
      _
    $region3: #{tubelet_embed_pallas.1} parent=1 // loop_header
      %s9 = sphi 0, %s13
      %p10 = scmp.ge.s32.totalorder %s9, 4
      %s19 = sphi 0, %s21
      %s22 = sphi 0, %s19
      %s23 = sphi 0, %s22
      %s39 = sphi 0, %s23
      %s43 = sphi 0, %s43
      %s45 = sphi 0, %s43
      %s46 = sphi 0, %s45
      %s60 = sphi 0, %s46
      %s64 = sphi 0, %s64
      %s66 = sphi 0, %s64
      %s67 = sphi 0, %s66
      %s81 = sphi 0, %s67
      %s87 = sphi 0, %s89
      %s90 = sphi 0, %s87
      %s91 = sphi 0, %s90
      %s107 = sphi 0, %s91
    $region4: #{tubelet_embed_pallas.1} parent=1 // loop_header_branch
      %12 = sbr.rel (%p10) target = $region8
    $region5: #{tubelet_embed_pallas.1} parent=1 // loop_body
      %s14 = ssub.s32 %s9, 1
      %s15 = ssub.s32 %s9, 2
      %s16 = sadd.s32 %s9, 1
      %s17 = ssub.s32 %s9, %s16
      %p18 = scmp.eq.s32.totalorder %s17, 0
      %s20 = sadd.s32 %s19, 1
      %s21 = scalar_select %p18, %s19, %s20
      %p24 = pneg %p18
      %p25 = scmp.eq.s32.totalorder %s9, 1
      %p26 = por %p24, %p25
      %p27 = scmp.ne.s32.totalorder %s19, %s22
      %p28 = scmp.eq.s32.totalorder %s9, 0
      %p29 = por %p27, %p28
      %p30 = scmp.ne.s32.totalorder %s19, %s22
      %p31 = scmp.eq.s32.totalorder %s14, 1
      %p32 = por %p30, %p31
      %p33 = scmp.ne.s32.totalorder %s22, %s23
      %p34 = scmp.eq.s32.totalorder %s14, 0
      %p35 = por %p33, %p34
      %p36 = scmp.ne.s32.totalorder %s22, %s23
      %p37 = scmp.eq.s32.totalorder %s15, 1
      %p38 = por %p36, %p37
      %p40 = scmp.ne.s32.totalorder %s23, %s39
      %p41 = scmp.eq.s32.totalorder %s15, 0
      %p42 = por %p40, %p41
      %s44 = sadd.s32 %s43, 1
      %p47 = scmp.eq.s32.totalorder %s9, 1
      %p48 = scmp.ne.s32.totalorder %s43, %s45
      %p49 = scmp.eq.s32.totalorder %s9, 0
      %p50 = por %p48, %p49
      %p51 = scmp.ne.s32.totalorder %s43, %s45
      %p52 = scmp.eq.s32.totalorder %s14, 1
      %p53 = por %p51, %p52
      %p54 = scmp.ne.s32.totalorder %s45, %s46
      %p55 = scmp.eq.s32.totalorder %s14, 0
      %p56 = por %p54, %p55
      %p57 = scmp.ne.s32.totalorder %s45, %s46
      %p58 = scmp.eq.s32.totalorder %s15, 1
      %p59 = por %p57, %p58
      %p61 = scmp.ne.s32.totalorder %s46, %s60
      %p62 = scmp.eq.s32.totalorder %s15, 0
      %p63 = por %p61, %p62
      %s65 = sadd.s32 %s64, 1
      %p68 = scmp.eq.s32.totalorder %s9, 1
      %p69 = scmp.ne.s32.totalorder %s64, %s66
      %p70 = scmp.eq.s32.totalorder %s9, 0
      %p71 = por %p69, %p70
      %p72 = scmp.ne.s32.totalorder %s64, %s66
      %p73 = scmp.eq.s32.totalorder %s14, 1
      %p74 = por %p72, %p73
      %p75 = scmp.ne.s32.totalorder %s66, %s67
      %p76 = scmp.eq.s32.totalorder %s14, 0
      %p77 = por %p75, %p76
      %p78 = scmp.ne.s32.totalorder %s66, %s67
      %p79 = scmp.eq.s32.totalorder %s15, 1
      %p80 = por %p78, %p79
      %p82 = scmp.ne.s32.totalorder %s67, %s81
      %p83 = scmp.eq.s32.totalorder %s15, 0
      %p84 = por %p82, %p83
      %s85 = ssub.s32 %s9, %s16
      %p86 = scmp.eq.s32.totalorder %s85, 0
      %s88 = sadd.s32 %s87, 1
      %s89 = scalar_select %p86, %s87, %s88
      %p92 = pneg %p86
      %p93 = scmp.eq.s32.totalorder %s9, 1
      %p94 = por %p92, %p93
      %p95 = scmp.ne.s32.totalorder %s87, %s90
      %p96 = scmp.eq.s32.totalorder %s9, 0
      %p97 = por %p95, %p96
      %p98 = scmp.ne.s32.totalorder %s87, %s90
      %p99 = scmp.eq.s32.totalorder %s14, 1
      %p100 = por %p98, %p99
      %p101 = scmp.ne.s32.totalorder %s90, %s91
      %p102 = scmp.eq.s32.totalorder %s14, 0
      %p103 = por %p101, %p102
      %p104 = scmp.ne.s32.totalorder %s90, %s91
      %p105 = scmp.eq.s32.totalorder %s15, 1
      %p106 = por %p104, %p105
      %p108 = scmp.ne.s32.totalorder %s91, %s107
      %p109 = scmp.eq.s32.totalorder %s15, 0
      %p110 = por %p108, %p109
      %p111 = scmp.le.s32.totalorder 1, %s9
      %p112 = scmp.lt.s32.totalorder %s9, 3
      %p113 = pnand %p111, %p112
      %p114 = pneg %p113
      // Predicated region
      $region9: #{tubelet_embed_pallas.1} parent=5 // pred_check
        _
      $region10: #{tubelet_embed_pallas.1} parent=5 // pred_check_branch
        %116 = sbr.rel (%p113) target = $region12
      $region11: #{tubelet_embed_pallas.1} parent=5 // pred_region
        %s117 = ssub.s32 %s9, 1
        // Predicated region
        $region13: #{tubelet_embed_pallas.1} parent=11 // pred_check
          %p118 = pneg %p56
        $region14: #{tubelet_embed_pallas.1} parent=11 // pred_check_branch
          %120 = sbr.rel (%p118) target = $region16
        $region15: #{tubelet_embed_pallas.1} parent=11 // pred_region
          _
        $region16: #{tubelet_embed_pallas.1} parent=11 // pred_fallthru
          _
        // Predicated region
        $region17: #{tubelet_embed_pallas.1} parent=11 // pred_check
          %p121 = pneg %p77
        $region18: #{tubelet_embed_pallas.1} parent=11 // pred_check_branch
          %123 = sbr.rel (%p121) target = $region20
        $region19: #{tubelet_embed_pallas.1} parent=11 // pred_region
          _
        $region20: #{tubelet_embed_pallas.1} parent=11 // pred_fallthru
          _
      $region12: #{tubelet_embed_pallas.1} parent=5 // pred_fallthru
        _
      %p124 = scmp.lt.s32.totalorder %s9, 2
      // Predicated region
      $region21: #{tubelet_embed_pallas.1} parent=5 // pred_check
        %p125 = pneg %p124
      $region22: #{tubelet_embed_pallas.1} parent=5 // pred_check_branch
        %127 = sbr.rel (%p125) target = $region24
      $region23: #{tubelet_embed_pallas.1} parent=5 // pred_region
        // Predicated region
        $region25: #{tubelet_embed_pallas.1} parent=23 // pred_check
          %p128 = pneg %p29
        $region26: #{tubelet_embed_pallas.1} parent=23 // pred_check_branch
          %130 = sbr.rel (%p128) target = $region28
        $region27: #{tubelet_embed_pallas.1} parent=23 // pred_region
          %s131 = smul.u32 28, %s9
          %s132 = ssub.s32 54, %s131
          %p133 = scmp.lt.s32.totalorder %s132, 28
          %s134 = scalar_select %p133, %s132, 28
          %s135 = smul.u32 4, %s134
          %s136 = smul.u32 %s135, 2
          %p137 = scmp.lt.s32.totalorder %s131, 53
          %s138 = scalar_select %p137, %s131, 53
          %s139 = smul.addr %s138, 2
          %s140 = smul.addr %s139, 4
          %s141 = scalar_lea.vmem %s0, %s140
          %s142 = smul.u32 28, %s9
          %s143 = ssub.s32 54, %s142
          %p144 = scmp.lt.s32.totalorder %s143, 28
          %s145 = scalar_select %p144, %s143, 28
          %s146 = smul.u32 4, %s145
          %s147 = smul.u32 %s146, 2
        $region28: #{tubelet_embed_pallas.1} parent=23 // pred_fallthru
          _
      $region24: #{tubelet_embed_pallas.1} parent=5 // pred_fallthru
        _
      %p148 = scmp.le.s32.totalorder 1, %s9
      %p149 = scmp.lt.s32.totalorder %s9, 3
      %p150 = pnand %p148, %p149
      %p151 = pneg %p150
      // Predicated region
      $region29: #{tubelet_embed_pallas.1} parent=5 // pred_check
        _
      $region30: #{tubelet_embed_pallas.1} parent=5 // pred_check_branch
        %153 = sbr.rel (%p150) target = $region32
      $region31: #{tubelet_embed_pallas.1} parent=5 // pred_region
        %s154 = ssub.s32 %s9, 1
        %s155 = smul.u32 28, %s14
        %s156 = ssub.s32 54, %s155
        %p157 = scmp.lt.s32.totalorder %s156, 28
        %s158 = scalar_select %p157, %s156, 28
        %s159 = smul.u32 4, %s158
        %s160 = smul.u32 %s159, 2
        %p161 = scmp.lt.s32.totalorder %s155, 53
        %s162 = scalar_select %p161, %s155, 53
        %s163 = smul.addr %s162, 2
        %s164 = smul.addr %s163, 4
        %s165 = scalar_lea.vmem %s0, %s164
        %p166 = pneg %p35
        %p167 = pneg %p32
        %p168 = pneg %p56
        %p169 = pneg %p53
        %p170 = pneg %p77
        %p171 = pneg %p74
        %p172 = pneg %p103
        %p173 = pneg %p100
        %s174 = sand.u32 %s90, 1
        %s175 = sand.u32 %s90, 1
        %s176 = smul.addr %s175, 224
        %s177 = scalar_lea.vmem [#allocation2], %s176
        %s178 = smul.u32 28, %s14
        %s179 = ssub.s32 54, %s178
        %p180 = scmp.lt.s32.totalorder %s179, 28
        %s181 = scalar_select %p180, %s179, 28
        %s182 = smul.u32 4, %s181
        %s183 = smul.u32 %s182, 2
        %p184 = scmp.lt.s32.totalorder %s178, 53
        %s185 = scalar_select %p184, %s178, 53
        %s186 = smul.addr %s185, 2
        %s187 = smul.addr %s186, 4
        %s188 = scalar_lea.vmem %s0, %s187
        %s189 = smul.u32 28, %s14
        %s190 = ssub.s32 54, %s189
        %p191 = scmp.lt.s32.totalorder %s190, 28
        %s192 = scalar_select %p191, %s190, 28
        %s193 = smul.u32 4, %s192
        %s194 = smul.u32 %s193, 2
        %s195 = smul.u32 28, %s14
        %s196 = ssub.s32 54, %s195
        %p197 = scmp.lt.s32.totalorder %s196, 28
        %s198 = scalar_select %p197, %s196, 28
        %s199 = smul.u32 8, %s198
        %v200 = vld [vmem:[%s188] sm:$0xff]
        %v201 = vld [vmem:[%s188 + $0x8] sm:$0xff]
        %v202 = vld [vmem:[%s188 + $0x10] sm:$0xff]
        %v203 = vld [vmem:[%s188 + $0x18] sm:$0xff]
        %v204 = vld [vmem:[%s188 + $0x20] sm:$0xff]
        %v205 = vld [vmem:[%s188 + $0x28] sm:$0xff]
        %v206 = vld [vmem:[%s188 + $0x30] sm:$0xff]
        %v207 = vld [vmem:[%s188 + $0x38] sm:$0xff]
        %v208 = vld [vmem:[%s188 + $0x40] sm:$0xff]
        %v209 = vld [vmem:[%s188 + $0x48] sm:$0xff]
        %v210 = vld [vmem:[%s188 + $0x50] sm:$0xff]
        %v211 = vld [vmem:[%s188 + $0x58] sm:$0xff]
        %v212 = vld [vmem:[%s188 + $0x60] sm:$0xff]
        %v213 = vld [vmem:[%s188 + $0x68] sm:$0xff]
        %v214 = vld [vmem:[%s188 + $0x70] sm:$0xff]
        %v215 = vld [vmem:[%s188 + $0x78] sm:$0xff]
        %v216 = vld [vmem:[%s188 + $0x80] sm:$0xff]
        %v217 = vld [vmem:[%s188 + $0x88] sm:$0xff]
        %v218 = vld [vmem:[%s188 + $0x90] sm:$0xff]
        %v219 = vld [vmem:[%s188 + $0x98] sm:$0xff]
        %v220 = vld [vmem:[%s188 + $0xa0] sm:$0xff]
        %v221 = vld [vmem:[%s188 + $0xa8] sm:$0xff]
        %v222 = vld [vmem:[%s188 + $0xb0] sm:$0xff]
        %v223 = vld [vmem:[%s188 + $0xb8] sm:$0xff]
        %v224 = vld [vmem:[%s188 + $0xc0] sm:$0xff]
        %v225 = vld [vmem:[%s188 + $0xc8] sm:$0xff]
        %v226 = vld [vmem:[%s188 + $0xd0] sm:$0xff]
        %v227 = vld [vmem:[%s188 + $0xd8] sm:$0xff]
        %v228 = vld [vmem:[%s1] sm:$0xf]
        %v229 = vld [vmem:[%s1 + $0x4] sm:$0xf]
        %v230 = vld [vmem:[%s1 + $0x8] sm:$0xf]
        %v231 = vld [vmem:[%s1 + $0xc] sm:$0xf]
        %v232 = vld [vmem:[%s1 + $0x10] sm:$0xf]
        %v233 = vld [vmem:[%s1 + $0x14] sm:$0xf]
        %v234 = vld [vmem:[%s1 + $0x18] sm:$0xf]
        %v235 = vld [vmem:[%s1 + $0x1c] sm:$0xf]
        %v236 = vld [vmem:[%s1 + $0x20] sm:$0xf]
        %v237 = vld [vmem:[%s1 + $0x24] sm:$0xf]
        %v238 = vld [vmem:[%s1 + $0x28] sm:$0xf]
        %v239 = vld [vmem:[%s1 + $0x2c] sm:$0xf]
        %v240 = vld [vmem:[%s1 + $0x30] sm:$0xf]
        %v241 = vld [vmem:[%s1 + $0x34] sm:$0xf]
        %v242 = vld [vmem:[%s1 + $0x38] sm:$0xf]
        %v243 = vld [vmem:[%s1 + $0x3c] sm:$0xf]
        %v244 = vld [vmem:[%s1 + $0x40] sm:$0xf]
        %v245 = vld [vmem:[%s1 + $0x44] sm:$0xf]
        %v246 = vld [vmem:[%s1 + $0x48] sm:$0xf]
        %v247 = vld [vmem:[%s1 + $0x4c] sm:$0xf]
        %v248 = vld [vmem:[%s1 + $0x50] sm:$0xf]
        %v249 = vld [vmem:[%s1 + $0x54] sm:$0xf]
        %v250 = vld [vmem:[%s1 + $0x58] sm:$0xf]
        %v251 = vld [vmem:[%s1 + $0x5c] sm:$0xf]
        %v252 = vld [vmem:[%s1 + $0x60] sm:$0xf]
        %v253 = vld [vmem:[%s1 + $0x64] sm:$0xf]
        %v254 = vld [vmem:[%s1 + $0x68] sm:$0xf]
        %v255 = vld [vmem:[%s1 + $0x6c] sm:$0xf]
        %v256 = vld [vmem:[%s1 + $0x70] sm:$0xf]
        %v257 = vld [vmem:[%s1 + $0x74] sm:$0xf]
        %v258 = vld [vmem:[%s1 + $0x78] sm:$0xf]
        %v259 = vld [vmem:[%s1 + $0x7c] sm:$0xf]
        %v260 = vld [vmem:[%s2] sm:$0x1]
        %v262 = vperm.slane %v260, 0
        %v292 = vunpack.c.l.b16 %v200
        %v293 = vunpack.c.h.b16 %v200
        %v294 = vunpack.c.l.b16 %v201
        %v295 = vunpack.c.h.b16 %v201
        %v296 = vunpack.c.l.b16 %v202
        %v297 = vunpack.c.h.b16 %v202
        %v298 = vunpack.c.l.b16 %v203
        %v299 = vunpack.c.h.b16 %v203
        %v300 = vunpack.c.l.b16 %v204
        %v301 = vunpack.c.h.b16 %v204
        %v302 = vunpack.c.l.b16 %v205
        %v303 = vunpack.c.h.b16 %v205
        %v304 = vunpack.c.l.b16 %v206
        %v305 = vunpack.c.h.b16 %v206
        %v306 = vunpack.c.l.b16 %v207
        %v307 = vunpack.c.h.b16 %v207
        %v308 = vunpack.c.l.b16 %v208
        %v309 = vunpack.c.h.b16 %v208
        %v310 = vunpack.c.l.b16 %v209
        %v311 = vunpack.c.h.b16 %v209
        %v312 = vunpack.c.l.b16 %v210
        %v313 = vunpack.c.h.b16 %v210
        %v314 = vunpack.c.l.b16 %v211
        %v315 = vunpack.c.h.b16 %v211
        %v316 = vunpack.c.l.b16 %v212
        %v317 = vunpack.c.h.b16 %v212
        %v318 = vunpack.c.l.b16 %v213
        %v319 = vunpack.c.h.b16 %v213
        %v320 = vunpack.c.l.b16 %v214
        %v321 = vunpack.c.h.b16 %v214
        %v322 = vunpack.c.l.b16 %v215
        %v323 = vunpack.c.h.b16 %v215
        %v324 = vunpack.c.l.b16 %v216
        %v325 = vunpack.c.h.b16 %v216
        %v326 = vunpack.c.l.b16 %v217
        %v327 = vunpack.c.h.b16 %v217
        %v328 = vunpack.c.l.b16 %v218
        %v329 = vunpack.c.h.b16 %v218
        %v330 = vunpack.c.l.b16 %v219
        %v331 = vunpack.c.h.b16 %v219
        %v332 = vunpack.c.l.b16 %v220
        %v333 = vunpack.c.h.b16 %v220
        %v334 = vunpack.c.l.b16 %v221
        %v335 = vunpack.c.h.b16 %v221
        %v336 = vunpack.c.l.b16 %v222
        %v337 = vunpack.c.h.b16 %v222
        %v338 = vunpack.c.l.b16 %v223
        %v339 = vunpack.c.h.b16 %v223
        %v340 = vunpack.c.l.b16 %v224
        %v341 = vunpack.c.h.b16 %v224
        %v342 = vunpack.c.l.b16 %v225
        %v343 = vunpack.c.h.b16 %v225
        %v344 = vunpack.c.l.b16 %v226
        %v345 = vunpack.c.h.b16 %v226
        %v346 = vunpack.c.l.b16 %v227
        %v347 = vunpack.c.h.b16 %v227
        %v348 = vpack.c.b16 %v294, %v292
        %v349 = vpack.c.b16 %v295, %v293
        %v350 = vpack.c.b16 %v298, %v296
        %v351 = vpack.c.b16 %v299, %v297
        %v352 = vpack.c.b16 %v302, %v300
        %v353 = vpack.c.b16 %v303, %v301
        %v354 = vpack.c.b16 %v306, %v304
        %v355 = vpack.c.b16 %v307, %v305
        %v356 = vpack.c.b16 %v310, %v308
        %v357 = vpack.c.b16 %v311, %v309
        %v358 = vpack.c.b16 %v314, %v312
        %v359 = vpack.c.b16 %v315, %v313
        %v360 = vpack.c.b16 %v318, %v316
        %v361 = vpack.c.b16 %v319, %v317
        %v362 = vpack.c.b16 %v322, %v320
        %v363 = vpack.c.b16 %v323, %v321
        %v364 = vpack.c.b16 %v326, %v324
        %v365 = vpack.c.b16 %v327, %v325
        %v366 = vpack.c.b16 %v330, %v328
        %v367 = vpack.c.b16 %v331, %v329
        %v368 = vpack.c.b16 %v334, %v332
        %v369 = vpack.c.b16 %v335, %v333
        %v370 = vpack.c.b16 %v338, %v336
        %v371 = vpack.c.b16 %v339, %v337
        %v372 = vpack.c.b16 %v342, %v340
        %v373 = vpack.c.b16 %v343, %v341
        %v374 = vpack.c.b16 %v346, %v344
        %v375 = vpack.c.b16 %v347, %v345
        %v436 = vunpack.c.l.b16 %v228
        %v437 = vunpack.c.l.b16 %v229
        %v438 = vunpack.c.l.b16 %v230
        %v439 = vunpack.c.l.b16 %v231
        %v440 = vunpack.c.l.b16 %v232
        %v441 = vunpack.c.l.b16 %v233
        %v442 = vunpack.c.l.b16 %v234
        %v443 = vunpack.c.l.b16 %v235
        %v444 = vunpack.c.l.b16 %v236
        %v445 = vunpack.c.l.b16 %v237
        %v446 = vunpack.c.l.b16 %v238
        %v447 = vunpack.c.l.b16 %v239
        %v448 = vunpack.c.l.b16 %v240
        %v449 = vunpack.c.l.b16 %v241
        %v450 = vunpack.c.l.b16 %v242
        %v451 = vunpack.c.l.b16 %v243
        %v452 = vunpack.c.l.b16 %v244
        %v453 = vunpack.c.l.b16 %v245
        %v454 = vunpack.c.l.b16 %v246
        %v455 = vunpack.c.l.b16 %v247
        %v456 = vunpack.c.l.b16 %v248
        %v457 = vunpack.c.l.b16 %v249
        %v458 = vunpack.c.l.b16 %v250
        %v459 = vunpack.c.l.b16 %v251
        %v460 = vunpack.c.l.b16 %v252
        %v461 = vunpack.c.l.b16 %v253
        %v462 = vunpack.c.l.b16 %v254
        %v463 = vunpack.c.l.b16 %v255
        %v464 = vunpack.c.l.b16 %v256
        %v465 = vunpack.c.l.b16 %v257
        %v466 = vunpack.c.l.b16 %v258
        %v467 = vunpack.c.l.b16 %v259
        %v468 = vpack.c.b16 %v437, %v436
        %v469 = vpack.c.b16 %v439, %v438
        %v470 = vpack.c.b16 %v441, %v440
        %v471 = vpack.c.b16 %v443, %v442
        %v472 = vpack.c.b16 %v445, %v444
        %v473 = vpack.c.b16 %v447, %v446
        %v474 = vpack.c.b16 %v449, %v448
        %v475 = vpack.c.b16 %v451, %v450
        %v476 = vpack.c.b16 %v453, %v452
        %v477 = vpack.c.b16 %v455, %v454
        %v478 = vpack.c.b16 %v457, %v456
        %v479 = vpack.c.b16 %v459, %v458
        %v480 = vpack.c.b16 %v461, %v460
        %v481 = vpack.c.b16 %v463, %v462
        %v482 = vpack.c.b16 %v465, %v464
        %v483 = vpack.c.b16 %v467, %v466
        %500 = vmatpush.bf16.msra.mxu0 %v475
        %501 = vmatpush.bf16.msra.mxu0 %v474
        %502 = vmatpush.bf16.msra.mxu0 %v473
        %503 = vmatpush.bf16.msra.mxu0 %v472
        %504 = vmatpush.bf16.msra.mxu0 %v471
        %505 = vmatpush.bf16.msra.mxu0 %v470
        %506 = vmatpush.bf16.msra.mxu0 %v469
        %507 = vmatpush.bf16.msra.mxu0 %v468
        %508 = vmatmul.bf16.gmra.mxu0 %v348
        %v509 = vpop.f32.mrf.mxu0
        %v510 = vadd.f32 %v262, %v509
        %v511 = vpop.f32.mrf.mxu0
        %v512 = vadd.f32 %v262, %v511
        %513 = vmatmul.bf16.gmra.mxu0 %v350
        %v514 = vpop.f32.mrf.mxu0
        %v515 = vadd.f32 %v262, %v514
        %v516 = vpop.f32.mrf.mxu0
        %v517 = vadd.f32 %v262, %v516
        %518 = vmatmul.bf16.gmra.mxu0 %v352
        %v519 = vpop.f32.mrf.mxu0
        %v520 = vadd.f32 %v262, %v519
        %v521 = vpop.f32.mrf.mxu0
        %v522 = vadd.f32 %v262, %v521
        %523 = vmatmul.bf16.gmra.mxu0 %v354
        %v524 = vpop.f32.mrf.mxu0
        %v525 = vadd.f32 %v262, %v524
        %v526 = vpop.f32.mrf.mxu0
        %v527 = vadd.f32 %v262, %v526
        %528 = vmatmul.bf16.gmra.mxu0 %v356
        %v529 = vpop.f32.mrf.mxu0
        %v530 = vadd.f32 %v262, %v529
        %v531 = vpop.f32.mrf.mxu0
        %v532 = vadd.f32 %v262, %v531
        %533 = vmatmul.bf16.gmra.mxu0 %v358
        %v534 = vpop.f32.mrf.mxu0
        %v535 = vadd.f32 %v262, %v534
        %v536 = vpop.f32.mrf.mxu0
        %v537 = vadd.f32 %v262, %v536
        %538 = vmatmul.bf16.gmra.mxu0 %v360
        %v539 = vpop.f32.mrf.mxu0
        %v540 = vadd.f32 %v262, %v539
        %v541 = vpop.f32.mrf.mxu0
        %v542 = vadd.f32 %v262, %v541
        %543 = vmatmul.bf16.gmra.mxu0 %v362
        %v544 = vpop.f32.mrf.mxu0
        %v545 = vadd.f32 %v262, %v544
        %v546 = vpop.f32.mrf.mxu0
        %v547 = vadd.f32 %v262, %v546
        %548 = vmatmul.bf16.gmra.mxu0 %v364
        %v549 = vpop.f32.mrf.mxu0
        %v550 = vadd.f32 %v262, %v549
        %v551 = vpop.f32.mrf.mxu0
        %v552 = vadd.f32 %v262, %v551
        %553 = vmatmul.bf16.gmra.mxu0 %v366
        %v554 = vpop.f32.mrf.mxu0
        %v555 = vadd.f32 %v262, %v554
        %v556 = vpop.f32.mrf.mxu0
        %v557 = vadd.f32 %v262, %v556
        %558 = vmatmul.bf16.gmra.mxu0 %v368
        %v559 = vpop.f32.mrf.mxu0
        %v560 = vadd.f32 %v262, %v559
        %v561 = vpop.f32.mrf.mxu0
        %v562 = vadd.f32 %v262, %v561
        %563 = vmatmul.bf16.gmra.mxu0 %v370
        %v564 = vpop.f32.mrf.mxu0
        %v565 = vadd.f32 %v262, %v564
        %v566 = vpop.f32.mrf.mxu0
        %v567 = vadd.f32 %v262, %v566
        %568 = vmatmul.bf16.gmra.mxu0 %v372
        %v569 = vpop.f32.mrf.mxu0
        %v570 = vadd.f32 %v262, %v569
        %v571 = vpop.f32.mrf.mxu0
        %v572 = vadd.f32 %v262, %v571
        %573 = vmatmul.bf16.gmra.mxu0 %v374
        %v574 = vpop.f32.mrf.mxu0
        %v575 = vadd.f32 %v262, %v574
        %v576 = vpop.f32.mrf.mxu0
        %v577 = vadd.f32 %v262, %v576
        %578 = vdwg.mxu0
        %579 = vmatpush.bf16.msra.mxu0 %v483
        %580 = vmatpush.bf16.msra.mxu0 %v482
        %581 = vmatpush.bf16.msra.mxu0 %v481
        %582 = vmatpush.bf16.msra.mxu0 %v480
        %583 = vmatpush.bf16.msra.mxu0 %v479
        %584 = vmatpush.bf16.msra.mxu0 %v478
        %585 = vmatpush.bf16.msra.mxu0 %v477
        %586 = vmatpush.bf16.msra.mxu0 %v476
        %587 = vmatmul.bf16.gmra.mxu0 %v349
        %v588 = vpop.f32.mrf.mxu0
        %v589 = vadd.f32 %v510, %v588
        %v590 = vpop.f32.mrf.mxu0
        %v591 = vadd.f32 %v512, %v590
        %592 = vmatmul.bf16.gmra.mxu0 %v351
        %v593 = vpop.f32.mrf.mxu0
        %v594 = vadd.f32 %v515, %v593
        %v595 = vpop.f32.mrf.mxu0
        %v596 = vadd.f32 %v517, %v595
        %597 = vmatmul.bf16.gmra.mxu0 %v353
        %v598 = vpop.f32.mrf.mxu0
        %v599 = vadd.f32 %v520, %v598
        %v600 = vpop.f32.mrf.mxu0
        %v601 = vadd.f32 %v522, %v600
        %602 = vmatmul.bf16.gmra.mxu0 %v355
        %v603 = vpop.f32.mrf.mxu0
        %v604 = vadd.f32 %v525, %v603
        %v605 = vpop.f32.mrf.mxu0
        %v606 = vadd.f32 %v527, %v605
        %607 = vmatmul.bf16.gmra.mxu0 %v357
        %v608 = vpop.f32.mrf.mxu0
        %v609 = vadd.f32 %v530, %v608
        %v610 = vpop.f32.mrf.mxu0
        %v611 = vadd.f32 %v532, %v610
        %612 = vmatmul.bf16.gmra.mxu0 %v359
        %v613 = vpop.f32.mrf.mxu0
        %v614 = vadd.f32 %v535, %v613
        %v615 = vpop.f32.mrf.mxu0
        %v616 = vadd.f32 %v537, %v615
        %617 = vmatmul.bf16.gmra.mxu0 %v361
        %v618 = vpop.f32.mrf.mxu0
        %v619 = vadd.f32 %v540, %v618
        %v620 = vpop.f32.mrf.mxu0
        %v621 = vadd.f32 %v542, %v620
        %622 = vmatmul.bf16.gmra.mxu0 %v363
        %v623 = vpop.f32.mrf.mxu0
        %v624 = vadd.f32 %v545, %v623
        %v625 = vpop.f32.mrf.mxu0
        %v626 = vadd.f32 %v547, %v625
        %627 = vmatmul.bf16.gmra.mxu0 %v365
        %v628 = vpop.f32.mrf.mxu0
        %v629 = vadd.f32 %v550, %v628
        %v630 = vpop.f32.mrf.mxu0
        %v631 = vadd.f32 %v552, %v630
        %632 = vmatmul.bf16.gmra.mxu0 %v367
        %v633 = vpop.f32.mrf.mxu0
        %v634 = vadd.f32 %v555, %v633
        %v635 = vpop.f32.mrf.mxu0
        %v636 = vadd.f32 %v557, %v635
        %637 = vmatmul.bf16.gmra.mxu0 %v369
        %v638 = vpop.f32.mrf.mxu0
        %v639 = vadd.f32 %v560, %v638
        %v640 = vpop.f32.mrf.mxu0
        %v641 = vadd.f32 %v562, %v640
        %642 = vmatmul.bf16.gmra.mxu0 %v371
        %v643 = vpop.f32.mrf.mxu0
        %v644 = vadd.f32 %v565, %v643
        %v645 = vpop.f32.mrf.mxu0
        %v646 = vadd.f32 %v567, %v645
        %647 = vmatmul.bf16.gmra.mxu0 %v373
        %v648 = vpop.f32.mrf.mxu0
        %v649 = vadd.f32 %v570, %v648
        %v650 = vpop.f32.mrf.mxu0
        %v651 = vadd.f32 %v572, %v650
        %652 = vmatmul.bf16.gmra.mxu0 %v375
        %v653 = vpop.f32.mrf.mxu0
        %v654 = vadd.f32 %v575, %v653
        %v655 = vpop.f32.mrf.mxu0
        %v656 = vadd.f32 %v577, %v655
        %657 = vdwg.mxu0
        %658 = vst [vmem:[%s177] sm:$0xff] %v589
        %659 = vst [vmem:[%s177 + $0x8] sm:$0xff] %v591
        %660 = vst [vmem:[%s177 + $0x10] sm:$0xff] %v594
        %661 = vst [vmem:[%s177 + $0x18] sm:$0xff] %v596
        %662 = vst [vmem:[%s177 + $0x20] sm:$0xff] %v599
        %663 = vst [vmem:[%s177 + $0x28] sm:$0xff] %v601
        %664 = vst [vmem:[%s177 + $0x30] sm:$0xff] %v604
        %665 = vst [vmem:[%s177 + $0x38] sm:$0xff] %v606
        %666 = vst [vmem:[%s177 + $0x40] sm:$0xff] %v609
        %667 = vst [vmem:[%s177 + $0x48] sm:$0xff] %v611
        %668 = vst [vmem:[%s177 + $0x50] sm:$0xff] %v614
        %669 = vst [vmem:[%s177 + $0x58] sm:$0xff] %v616
        %670 = vst [vmem:[%s177 + $0x60] sm:$0xff] %v619
        %671 = vst [vmem:[%s177 + $0x68] sm:$0xff] %v621
        %672 = vst [vmem:[%s177 + $0x70] sm:$0xff] %v624
        %673 = vst [vmem:[%s177 + $0x78] sm:$0xff] %v626
        %674 = vst [vmem:[%s177 + $0x80] sm:$0xff] %v629
        %675 = vst [vmem:[%s177 + $0x88] sm:$0xff] %v631
        %676 = vst [vmem:[%s177 + $0x90] sm:$0xff] %v634
        %677 = vst [vmem:[%s177 + $0x98] sm:$0xff] %v636
        %678 = vst [vmem:[%s177 + $0xa0] sm:$0xff] %v639
        %679 = vst [vmem:[%s177 + $0xa8] sm:$0xff] %v641
        %680 = vst [vmem:[%s177 + $0xb0] sm:$0xff] %v644
        %681 = vst [vmem:[%s177 + $0xb8] sm:$0xff] %v646
        %682 = vst [vmem:[%s177 + $0xc0] sm:$0xff] %v649
        %683 = vst [vmem:[%s177 + $0xc8] sm:$0xff] %v651
        %684 = vst [vmem:[%s177 + $0xd0] sm:$0xff] %v654
        %685 = vst [vmem:[%s177 + $0xd8] sm:$0xff] %v656
        %s686 = sand.u32 %s90, 1
        %s687 = sand.u32 %s90, 1
        %s688 = smul.addr %s687, 224
        %s689 = scalar_lea.vmem [#allocation2], %s688
        // Predicated region
        $region33: #{tubelet_embed_pallas.1} parent=31 // pred_check
          %p690 = pneg %p100
        $region34: #{tubelet_embed_pallas.1} parent=31 // pred_check_branch
          %692 = sbr.rel (%p690) target = $region36
        $region35: #{tubelet_embed_pallas.1} parent=31 // pred_region
          %s693 = smul.u32 28, %s14
          %s694 = ssub.s32 54, %s693
          %p695 = scmp.lt.s32.totalorder %s694, 28
          %s696 = scalar_select %p695, %s694, 28
          %s697 = smul.u32 8, %s696
          %p698 = scmp.ne.s32.totalorder 0, %s697
          %s699 = smul.addr %s693, 8
          %s700 = scalar_lea.vmem %s3, %s699
          // Predicated region
          $region37: #{tubelet_embed_pallas.1} parent=35 // pred_check
            %p701 = pneg %p698
          $region38: #{tubelet_embed_pallas.1} parent=35 // pred_check_branch
            %703 = sbr.rel (%p701) target = $region40
          $region39: #{tubelet_embed_pallas.1} parent=35 // pred_region
            // Predicated region
            $region41: #{tubelet_embed_pallas.1} parent=39 // pred_check
              _
            $region42: #{tubelet_embed_pallas.1} parent=39 // pred_check_branch
              %705 = sbr.rel (0) target = $region44
            $region43: #{tubelet_embed_pallas.1} parent=39 // pred_region
              // Predicated region
              $region63: #{tubelet_embed_pallas.1} parent=43 // pred_check
                _
              $region64: #{tubelet_embed_pallas.1} parent=43 // pred_check_branch
                %810 = sbr.rel (0) target = $region66
              $region65: #{tubelet_embed_pallas.1} parent=43 // pred_region
                %s811 = sdiv.u32.pop %s696, 28
                %s812 = srem.u32.pop %s696, 28
                // While loop
                $region67: #{tubelet_embed_pallas.1} parent=65 // loop_pre_header
                  _
                $region68: #{tubelet_embed_pallas.1} parent=65 // loop_header
                  %s814 = sphi 0, %s816
                  %p815 = scmp.ge.s32.totalorder %s814, %s811
                  %s819 = sphi 0, %s880
                  %s820 = sphi %s689, %s883
                  %s821 = sphi %s700, %s884
                $region69: #{tubelet_embed_pallas.1} parent=65 // loop_header_branch
                  %818 = sbr.rel (%p815) target = $region73
                $region70: #{tubelet_embed_pallas.1} parent=65 // loop_body
                  %v822 = vld [vmem:[%s820] sm:$0xff]
                  %823 = vst [vmem:[%s821] sm:$0xff] %v822
                  %v824 = vld [vmem:[%s820 + $0x8] sm:$0xff]
                  %825 = vst [vmem:[%s821 + $0x8] sm:$0xff] %v824
                  %v826 = vld [vmem:[%s820 + $0x10] sm:$0xff]
                  %827 = vst [vmem:[%s821 + $0x10] sm:$0xff] %v826
                  %v828 = vld [vmem:[%s820 + $0x18] sm:$0xff]
                  %829 = vst [vmem:[%s821 + $0x18] sm:$0xff] %v828
                  %v830 = vld [vmem:[%s820 + $0x20] sm:$0xff]
                  %831 = vst [vmem:[%s821 + $0x20] sm:$0xff] %v830
                  %v832 = vld [vmem:[%s820 + $0x28] sm:$0xff]
                  %833 = vst [vmem:[%s821 + $0x28] sm:$0xff] %v832
                  %v834 = vld [vmem:[%s820 + $0x30] sm:$0xff]
                  %835 = vst [vmem:[%s821 + $0x30] sm:$0xff] %v834
                  %v836 = vld [vmem:[%s820 + $0x38] sm:$0xff]
                  %837 = vst [vmem:[%s821 + $0x38] sm:$0xff] %v836
                  %v838 = vld [vmem:[%s820 + $0x40] sm:$0xff]
                  %839 = vst [vmem:[%s821 + $0x40] sm:$0xff] %v838
                  %v840 = vld [vmem:[%s820 + $0x48] sm:$0xff]
                  %841 = vst [vmem:[%s821 + $0x48] sm:$0xff] %v840
                  %v842 = vld [vmem:[%s820 + $0x50] sm:$0xff]
                  %843 = vst [vmem:[%s821 + $0x50] sm:$0xff] %v842
                  %v844 = vld [vmem:[%s820 + $0x58] sm:$0xff]
                  %845 = vst [vmem:[%s821 + $0x58] sm:$0xff] %v844
                  %v846 = vld [vmem:[%s820 + $0x60] sm:$0xff]
                  %847 = vst [vmem:[%s821 + $0x60] sm:$0xff] %v846
                  %v848 = vld [vmem:[%s820 + $0x68] sm:$0xff]
                  %849 = vst [vmem:[%s821 + $0x68] sm:$0xff] %v848
                  %v850 = vld [vmem:[%s820 + $0x70] sm:$0xff]
                  %851 = vst [vmem:[%s821 + $0x70] sm:$0xff] %v850
                  %v852 = vld [vmem:[%s820 + $0x78] sm:$0xff]
                  %853 = vst [vmem:[%s821 + $0x78] sm:$0xff] %v852
                  %v854 = vld [vmem:[%s820 + $0x80] sm:$0xff]
                  %855 = vst [vmem:[%s821 + $0x80] sm:$0xff] %v854
                  %v856 = vld [vmem:[%s820 + $0x88] sm:$0xff]
                  %857 = vst [vmem:[%s821 + $0x88] sm:$0xff] %v856
                  %v858 = vld [vmem:[%s820 + $0x90] sm:$0xff]
                  %859 = vst [vmem:[%s821 + $0x90] sm:$0xff] %v858
                  %v860 = vld [vmem:[%s820 + $0x98] sm:$0xff]
                  %861 = vst [vmem:[%s821 + $0x98] sm:$0xff] %v860
                  %v862 = vld [vmem:[%s820 + $0xa0] sm:$0xff]
                  %863 = vst [vmem:[%s821 + $0xa0] sm:$0xff] %v862
                  %v864 = vld [vmem:[%s820 + $0xa8] sm:$0xff]
                  %865 = vst [vmem:[%s821 + $0xa8] sm:$0xff] %v864
                  %v866 = vld [vmem:[%s820 + $0xb0] sm:$0xff]
                  %867 = vst [vmem:[%s821 + $0xb0] sm:$0xff] %v866
                  %v868 = vld [vmem:[%s820 + $0xb8] sm:$0xff]
                  %869 = vst [vmem:[%s821 + $0xb8] sm:$0xff] %v868
                  %v870 = vld [vmem:[%s820 + $0xc0] sm:$0xff]
                  %871 = vst [vmem:[%s821 + $0xc0] sm:$0xff] %v870
                  %v872 = vld [vmem:[%s820 + $0xc8] sm:$0xff]
                  %873 = vst [vmem:[%s821 + $0xc8] sm:$0xff] %v872
                  %v874 = vld [vmem:[%s820 + $0xd0] sm:$0xff]
                  %875 = vst [vmem:[%s821 + $0xd0] sm:$0xff] %v874
                  %v876 = vld [vmem:[%s820 + $0xd8] sm:$0xff]
                  %877 = vst [vmem:[%s821 + $0xd8] sm:$0xff] %v876
                  %s878 = sadd.s32 1, %s819
                  %p879 = scmp.ge.s32.totalorder %s878, %s811
                  %s880 = scalar_select %p879, 0, %s878
                  %s881 = smul.u32 %s880, 224
                  %s882 = smul.u32 %s880, 224
                  %s883 = scalar_lea.vmem %s689, %s881 [#allocation2]
                  %s884 = scalar_lea.vmem %s700, %s882
                $region71: #{tubelet_embed_pallas.1} parent=65 // loop_footer
                  %s816 = sadd.s32 %s814, 1
                $region72: #{tubelet_embed_pallas.1} parent=65 // loop_footer_branch
                  %813 = sbr.rel target = $region68
                $region73: #{tubelet_embed_pallas.1} parent=65 // loop_exit
                  _
                %s885 = sdiv.u32.pop %s696, 28
                %s886 = srem.u32.pop %s696, 28
                %s887 = smul.u32 %s885, 28
                %s888 = smul.u32 8, %s887
                %s889 = scalar_lea.vmem %s689, %s888 [#allocation2]
                %s890 = smul.u32 8, %s887
                %s891 = scalar_lea.vmem %s700, %s890
                // While loop
                $region74: #{tubelet_embed_pallas.1} parent=65 // loop_pre_header
                  _
                $region75: #{tubelet_embed_pallas.1} parent=65 // loop_header
                  %s893 = sphi 0, %s895
                  %p894 = scmp.ge.s32.totalorder %s893, %s886
                  %s898 = sphi 0, %s905
                  %s899 = sphi %s889, %s908
                  %s900 = sphi %s891, %s909
                $region76: #{tubelet_embed_pallas.1} parent=65 // loop_header_branch
                  %897 = sbr.rel (%p894) target = $region80
                $region77: #{tubelet_embed_pallas.1} parent=65 // loop_body
                  %v901 = vld [vmem:[%s899] sm:$0xff]
                  %902 = vst [vmem:[%s900] sm:$0xff] %v901
                  %s903 = sadd.s32 1, %s898
                  %p904 = scmp.ge.s32.totalorder %s903, %s886
                  %s905 = scalar_select %p904, 0, %s903
                  %s906 = smul.u32 %s905, 8
                  %s907 = smul.u32 %s905, 8
                  %s908 = scalar_lea.vmem %s889, %s906 [#allocation2]
                  %s909 = scalar_lea.vmem %s891, %s907
                $region78: #{tubelet_embed_pallas.1} parent=65 // loop_footer
                  %s895 = sadd.s32 %s893, 1
                $region79: #{tubelet_embed_pallas.1} parent=65 // loop_footer_branch
                  %892 = sbr.rel target = $region75
                $region80: #{tubelet_embed_pallas.1} parent=65 // loop_exit
                  _
              $region66: #{tubelet_embed_pallas.1} parent=43 // pred_fallthru
                _
              // Predicated region
              $region81: #{tubelet_embed_pallas.1} parent=43 // pred_check
                _
              $region82: #{tubelet_embed_pallas.1} parent=43 // pred_check_branch
                %911 = sbr.rel target = $region84
              $region83: #{tubelet_embed_pallas.1} parent=43 // pred_region
                _
              $region84: #{tubelet_embed_pallas.1} parent=43 // pred_fallthru
                _
            $region44: #{tubelet_embed_pallas.1} parent=39 // pred_fallthru
              _
            // Predicated region
            $region45: #{tubelet_embed_pallas.1} parent=39 // pred_check
              _
            $region46: #{tubelet_embed_pallas.1} parent=39 // pred_check_branch
              %707 = sbr.rel target = $region48
            $region47: #{tubelet_embed_pallas.1} parent=39 // pred_region
              %s709 = ssub.s32 256, 1
              %s710 = sdiv.u32.pop %s696, 28
              %s711 = srem.u32.pop %s696, 28
              // While loop
              $region49: #{tubelet_embed_pallas.1} parent=47 // loop_pre_header
                _
              $region50: #{tubelet_embed_pallas.1} parent=47 // loop_header
                %s713 = sphi 0, %s715
                %p714 = scmp.ge.s32.totalorder %s713, %s710
                %s718 = sphi 0, %s779
                %s719 = sphi %s689, %s782
                %s720 = sphi %s700, %s783
              $region51: #{tubelet_embed_pallas.1} parent=47 // loop_header_branch
                %717 = sbr.rel (%p714) target = $region55
              $region52: #{tubelet_embed_pallas.1} parent=47 // loop_body
                %v721 = vld [vmem:[%s719] sm:%s709]
                %722 = vst [vmem:[%s720] sm:%s709] %v721
                %v723 = vld [vmem:[%s719 + $0x8] sm:%s709]
                %724 = vst [vmem:[%s720 + $0x8] sm:%s709] %v723
                %v725 = vld [vmem:[%s719 + $0x10] sm:%s709]
                %726 = vst [vmem:[%s720 + $0x10] sm:%s709] %v725
                %v727 = vld [vmem:[%s719 + $0x18] sm:%s709]
                %728 = vst [vmem:[%s720 + $0x18] sm:%s709] %v727
                %v729 = vld [vmem:[%s719 + $0x20] sm:%s709]
                %730 = vst [vmem:[%s720 + $0x20] sm:%s709] %v729
                %v731 = vld [vmem:[%s719 + $0x28] sm:%s709]
                %732 = vst [vmem:[%s720 + $0x28] sm:%s709] %v731
                %v733 = vld [vmem:[%s719 + $0x30] sm:%s709]
                %734 = vst [vmem:[%s720 + $0x30] sm:%s709] %v733
                %v735 = vld [vmem:[%s719 + $0x38] sm:%s709]
                %736 = vst [vmem:[%s720 + $0x38] sm:%s709] %v735
                %v737 = vld [vmem:[%s719 + $0x40] sm:%s709]
                %738 = vst [vmem:[%s720 + $0x40] sm:%s709] %v737
                %v739 = vld [vmem:[%s719 + $0x48] sm:%s709]
                %740 = vst [vmem:[%s720 + $0x48] sm:%s709] %v739
                %v741 = vld [vmem:[%s719 + $0x50] sm:%s709]
                %742 = vst [vmem:[%s720 + $0x50] sm:%s709] %v741
                %v743 = vld [vmem:[%s719 + $0x58] sm:%s709]
                %744 = vst [vmem:[%s720 + $0x58] sm:%s709] %v743
                %v745 = vld [vmem:[%s719 + $0x60] sm:%s709]
                %746 = vst [vmem:[%s720 + $0x60] sm:%s709] %v745
                %v747 = vld [vmem:[%s719 + $0x68] sm:%s709]
                %748 = vst [vmem:[%s720 + $0x68] sm:%s709] %v747
                %v749 = vld [vmem:[%s719 + $0x70] sm:%s709]
                %750 = vst [vmem:[%s720 + $0x70] sm:%s709] %v749
                %v751 = vld [vmem:[%s719 + $0x78] sm:%s709]
                %752 = vst [vmem:[%s720 + $0x78] sm:%s709] %v751
                %v753 = vld [vmem:[%s719 + $0x80] sm:%s709]
                %754 = vst [vmem:[%s720 + $0x80] sm:%s709] %v753
                %v755 = vld [vmem:[%s719 + $0x88] sm:%s709]
                %756 = vst [vmem:[%s720 + $0x88] sm:%s709] %v755
                %v757 = vld [vmem:[%s719 + $0x90] sm:%s709]
                %758 = vst [vmem:[%s720 + $0x90] sm:%s709] %v757
                %v759 = vld [vmem:[%s719 + $0x98] sm:%s709]
                %760 = vst [vmem:[%s720 + $0x98] sm:%s709] %v759
                %v761 = vld [vmem:[%s719 + $0xa0] sm:%s709]
                %762 = vst [vmem:[%s720 + $0xa0] sm:%s709] %v761
                %v763 = vld [vmem:[%s719 + $0xa8] sm:%s709]
                %764 = vst [vmem:[%s720 + $0xa8] sm:%s709] %v763
                %v765 = vld [vmem:[%s719 + $0xb0] sm:%s709]
                %766 = vst [vmem:[%s720 + $0xb0] sm:%s709] %v765
                %v767 = vld [vmem:[%s719 + $0xb8] sm:%s709]
                %768 = vst [vmem:[%s720 + $0xb8] sm:%s709] %v767
                %v769 = vld [vmem:[%s719 + $0xc0] sm:%s709]
                %770 = vst [vmem:[%s720 + $0xc0] sm:%s709] %v769
                %v771 = vld [vmem:[%s719 + $0xc8] sm:%s709]
                %772 = vst [vmem:[%s720 + $0xc8] sm:%s709] %v771
                %v773 = vld [vmem:[%s719 + $0xd0] sm:%s709]
                %774 = vst [vmem:[%s720 + $0xd0] sm:%s709] %v773
                %v775 = vld [vmem:[%s719 + $0xd8] sm:%s709]
                %776 = vst [vmem:[%s720 + $0xd8] sm:%s709] %v775
                %s777 = sadd.s32 1, %s718
                %p778 = scmp.ge.s32.totalorder %s777, %s710
                %s779 = scalar_select %p778, 0, %s777
                %s780 = smul.u32 %s779, 224
                %s781 = smul.u32 %s779, 224
                %s782 = scalar_lea.vmem %s689, %s780 [#allocation2]
                %s783 = scalar_lea.vmem %s700, %s781
              $region53: #{tubelet_embed_pallas.1} parent=47 // loop_footer
                %s715 = sadd.s32 %s713, 1
              $region54: #{tubelet_embed_pallas.1} parent=47 // loop_footer_branch
                %712 = sbr.rel target = $region50
              $region55: #{tubelet_embed_pallas.1} parent=47 // loop_exit
                _
              %s784 = sdiv.u32.pop %s696, 28
              %s785 = srem.u32.pop %s696, 28
              %s786 = smul.u32 %s784, 28
              %s787 = smul.u32 8, %s786
              %s788 = scalar_lea.vmem %s689, %s787 [#allocation2]
              %s789 = smul.u32 8, %s786
              %s790 = scalar_lea.vmem %s700, %s789
              // While loop
              $region56: #{tubelet_embed_pallas.1} parent=47 // loop_pre_header
                _
              $region57: #{tubelet_embed_pallas.1} parent=47 // loop_header
                %s792 = sphi 0, %s794
                %p793 = scmp.ge.s32.totalorder %s792, %s785
                %s797 = sphi 0, %s804
                %s798 = sphi %s788, %s807
                %s799 = sphi %s790, %s808
              $region58: #{tubelet_embed_pallas.1} parent=47 // loop_header_branch
                %796 = sbr.rel (%p793) target = $region62
              $region59: #{tubelet_embed_pallas.1} parent=47 // loop_body
                %v800 = vld [vmem:[%s798] sm:%s709]
                %801 = vst [vmem:[%s799] sm:%s709] %v800
                %s802 = sadd.s32 1, %s797
                %p803 = scmp.ge.s32.totalorder %s802, %s785
                %s804 = scalar_select %p803, 0, %s802
                %s805 = smul.u32 %s804, 8
                %s806 = smul.u32 %s804, 8
                %s807 = scalar_lea.vmem %s788, %s805 [#allocation2]
                %s808 = scalar_lea.vmem %s790, %s806
              $region60: #{tubelet_embed_pallas.1} parent=47 // loop_footer
                %s794 = sadd.s32 %s792, 1
              $region61: #{tubelet_embed_pallas.1} parent=47 // loop_footer_branch
                %791 = sbr.rel target = $region57
              $region62: #{tubelet_embed_pallas.1} parent=47 // loop_exit
                _
            $region48: #{tubelet_embed_pallas.1} parent=39 // pred_fallthru
              _
          $region40: #{tubelet_embed_pallas.1} parent=35 // pred_fallthru
            _
          %912 = vnop
        $region36: #{tubelet_embed_pallas.1} parent=31 // pred_fallthru
          _
      $region32: #{tubelet_embed_pallas.1} parent=5 // pred_fallthru
        _
      %p913 = scmp.le.s32.totalorder 2, %s9
      // Predicated region
      $region85: #{tubelet_embed_pallas.1} parent=5 // pred_check
        %p914 = pneg %p913
      $region86: #{tubelet_embed_pallas.1} parent=5 // pred_check_branch
        %916 = sbr.rel (%p914) target = $region88
      $region87: #{tubelet_embed_pallas.1} parent=5 // pred_region
        %s917 = ssub.s32 %s9, 2
        // Predicated region
        $region89: #{tubelet_embed_pallas.1} parent=87 // pred_check
          %p918 = pneg %p106
        $region90: #{tubelet_embed_pallas.1} parent=87 // pred_check_branch
          %920 = sbr.rel (%p918) target = $region92
        $region91: #{tubelet_embed_pallas.1} parent=87 // pred_region
          %s921 = sand.u32 %s91, 1
          %s922 = sand.u32 %s91, 1
          %s923 = smul.addr %s922, 224
          %s924 = scalar_lea.vmem [#allocation2], %s923
        $region92: #{tubelet_embed_pallas.1} parent=87 // pred_fallthru
          _
      $region88: #{tubelet_embed_pallas.1} parent=5 // pred_fallthru
        _
    $region6: #{tubelet_embed_pallas.1} parent=1 // loop_footer
      %s13 = sadd.s32 1, %s9
    $region7: #{tubelet_embed_pallas.1} parent=1 // loop_footer_branch
      %8 = sbr.rel target = $region3
    $region8: #{tubelet_embed_pallas.1} parent=1 // loop_exit
      _

</llo_original>
